<compile_context>
chip_gen: v7x
topology: tpu7x:2x2x1
jax: 0.10.0
libtpu: 0.0.40
codegen_flags: <defaults>
</compile_context>

<pallas_src>
import functools

import jax
import jax.numpy as jnp
from jax.experimental import pallas as pl
from jax.experimental.pallas import tpu as pltpu

_LANES = 128
_MAX_TILE_ROWS = 2048           # 2048x128 f32 = 1 MiB per block
_PALLAS_MIN_ELEMENTS = 1 << 16  # below this, fused XLA beats a pallas dispatch


def _round_up(a, m):
    return ((a + m - 1) // m) * m


def _leaky_linear_kernel(x_ref, params_ref, o_ref, *, negative_slope):
    # params_ref (SMEM, shape (2,)): [w, b]
    w = params_ref[0]
    b = params_ref[1]

    x = x_ref[...]                       # (tile_rows, 128) f32 block in VMEM
    v1 = x * w + b                       # linear(x)
    v3 = v1 * w + b                      # linear(linear(x)), reference rounding order
    scale = jnp.where(v1 > 0.0, jnp.float32(1.0), jnp.float32(negative_slope))
    o_ref[...] = (v3 * scale).astype(o_ref.dtype)   # where(v1>0, v3, v3*slope)


@functools.partial(jax.jit, static_argnums=(3,), static_argnames=("force_pallas",))
def model_forward(x, weight, bias, negative_slope, *, force_pallas=False):
    """x: (B, 1); weight: (1, 1); bias: (1,). Returns (B, 1) in x.dtype."""
    orig_shape = x.shape
    orig_dtype = x.dtype
    assert orig_shape[-1] == 1, "Linear(1, 1) expects feature dim of 1"

    w = weight.reshape(()).astype(jnp.float32)
    b = bias.reshape(()).astype(jnp.float32)
    ns = float(negative_slope)

    flat = x.reshape(-1).astype(jnp.float32)
    n = flat.shape[0]

    # Tiny-batch fast path: one fused XLA elementwise op, no dispatch/pad/slice.
    if n < _PALLAS_MIN_ELEMENTS and not force_pallas:
        v1 = flat * w + b
        v3 = v1 * w + b
        out = jnp.where(v1 > 0.0, v3, v3 * jnp.float32(ns))
        return out.astype(orig_dtype).reshape(orig_shape)

    # Lane-dense layout: (rows, 128).  Only pad the <=127 elements needed to
    # complete the last lane row; skip the pad entirely when n % 128 == 0.
    rows = -(-n // _LANES)
    lane_pad = rows * _LANES - n
    if lane_pad:
        flat = jnp.pad(flat, (0, lane_pad))
    x2d = flat.reshape(rows, _LANES)

    # Tile the row axis.  Keep >=2 grid steps whenever possible (pipelining +
    # v7x megacore sharding); Pallas masks the ragged final block.
    if rows > 8:
        tile_rows = min(_MAX_TILE_ROWS, _round_up(-(-rows // 2), 8))
    else:
        tile_rows = 8
    grid = pl.cdiv(rows, tile_rows)

    params = jnp.stack([w, b])
    kernel = functools.partial(_leaky_linear_kernel, negative_slope=ns)

    out2d = pl.pallas_call(
        kernel,
        out_shape=jax.ShapeDtypeStruct((rows, _LANES), orig_dtype),
        grid_spec=pltpu.PrefetchScalarGridSpec(
            num_scalar_prefetch=0,
            grid=(grid,),
            in_specs=[
                pl.BlockSpec((tile_rows, _LANES), lambda i: (i, 0)),    # x tiles
                pl.BlockSpec(memory_space=pltpu.MemorySpace.SMEM),      # [w, b]
            ],
            out_specs=pl.BlockSpec((tile_rows, _LANES), lambda i: (i, 0)),
        ),
        compiler_params=pltpu.CompilerParams(
            dimension_semantics=("parallel",)),
    )(x2d, params)

    out = out2d.reshape(-1)
    if lane_pad:
        out = out[:n]
    return out.reshape(orig_shape)


if __name__ == "__main__":
    key = jax.random.PRNGKey(0)
    kx, kw, kb = jax.random.split(key, 3)

    # Small batch consistent with the (N, 1) input the module expects.
    # Not a multiple of 128 on purpose: exercises the lane-pad + ragged-tile path.
    B = 300
    x = jax.random.normal(kx, (B, 1), dtype=jnp.float32)

    # Deterministic parameter init (mimics nn.Linear's uniform bound for in_features=1).
    weight = jax.random.uniform(kw, (1, 1), minval=-1.0, maxval=1.0, dtype=jnp.float32)
    bias = jax.random.uniform(kb, (1,), minval=-1.0, maxval=1.0, dtype=jnp.float32)
    negative_slope = 0.01

    # force_pallas=True so the small test batch actually exercises the kernel
    # (production callers at this size would take the fused-XLA fast path).
    out = model_forward(x, weight, bias, negative_slope, force_pallas=True)
    out = jax.block_until_ready(out)

    # Pure-JAX reference (same single Linear applied twice, as in the module).
    v1 = x @ weight.T + bias
    v3 = v1 @ weight.T + bias
    ref = jnp.where(v1 > 0, v3, v3 * negative_slope)
    assert out.shape == ref.shape, (out.shape, ref.shape)
    assert out.dtype == ref.dtype, (out.dtype, ref.dtype)
    assert jnp.allclose(out, ref, atol=1e-5, rtol=1e-5), (out, ref)

    # Also sanity-check the tiny-batch (non-Pallas) fast path.
    out_small = jax.block_until_ready(model_forward(x, weight, bias, negative_slope))
    assert jnp.allclose(out_small, ref, atol=1e-5, rtol=1e-5)

    print("KERNEL_OK")
</pallas_src>

<mosaic_0001>
module attributes {stable_mosaic.version = 11 : i64} {
  func.func @_leaky_linear_kernel(%arg0: i32, %arg1: memref<8x128xf32, #tpu.memory_space<vmem>>, %arg2: memref<2xf32, #tpu.memory_space<smem>>, %arg3: memref<8x128xf32, #tpu.memory_space<vmem>>) attributes {dimension_semantics = [#tpu.dimension_semantics<parallel>], iteration_bounds = array<i64: 1>, scalar_prefetch = 0 : i64, scratch_operands = 0 : i64, tpu.core_type = #tpu.core_type<tc>, window_params = [{transform_indices = @transform_0, window_bounds = array<i64: 8, 128>}, {transform_indices = @transform_1, window_bounds = array<i64: 2>}, {transform_indices = @transform_2, window_bounds = array<i64: 8, 128>}]} {
    %c0 = arith.constant 0 : index
    %0 = memref.load %arg2[%c0] : memref<2xf32, #tpu.memory_space<smem>>
    %c1 = arith.constant 1 : index
    %1 = memref.load %arg2[%c1] : memref<2xf32, #tpu.memory_space<smem>>
    %c0_0 = arith.constant 0 : index
    %c0_1 = arith.constant 0 : index
    %2 = vector.load %arg1[%c0_0, %c0_1] : memref<8x128xf32, #tpu.memory_space<vmem>>, vector<8x128xf32>
    %3 = vector.broadcast %0 : f32 to vector<8x128xf32>
    %4 = arith.mulf %2, %3 : vector<8x128xf32>
    %5 = vector.broadcast %1 : f32 to vector<8x128xf32>
    %6 = arith.addf %4, %5 : vector<8x128xf32>
    %7 = vector.broadcast %0 : f32 to vector<8x128xf32>
    %8 = arith.mulf %6, %7 : vector<8x128xf32>
    %9 = vector.broadcast %1 : f32 to vector<8x128xf32>
    %10 = arith.addf %8, %9 : vector<8x128xf32>
    %cst = arith.constant 0.000000e+00 : f32
    %11 = vector.broadcast %cst : f32 to vector<8x128xf32>
    %12 = arith.cmpf ogt, %6, %11 : vector<8x128xf32>
    %cst_2 = arith.constant 1.000000e+00 : f32
    %cst_3 = arith.constant 0.00999999977 : f32
    %13 = vector.broadcast %cst_2 : f32 to vector<8x128xf32>
    %14 = vector.broadcast %cst_3 : f32 to vector<8x128xf32>
    %15 = arith.select %12, %13, %14 : vector<8x128xi1>, vector<8x128xf32>
    %16 = arith.mulf %10, %15 : vector<8x128xf32>
    %c0_4 = arith.constant 0 : index
    %c0_5 = arith.constant 0 : index
    %17 = vector.load %arg3[%c0_4, %c0_5] : memref<8x128xf32, #tpu.memory_space<vmem>>, vector<8x128xf32>
    tpu.vector_store %arg3[%c0_4, %c0_5], %16 {strides = array<i32>} : memref<8x128xf32, #tpu.memory_space<vmem>>, vector<8x128xf32>,
    return
  }
  func.func @transform_0(%arg0: i32) -> (i32, i32) {
    %c0_i32 = arith.constant 0 : i32
    %c0_i32_0 = arith.constant 0 : i32
    return %arg0, %c0_i32 : i32, i32
  }
  func.func @transform_1(%arg0: i32) -> i32 {
    %c0_i32 = arith.constant 0 : i32
    %c0_i32_0 = arith.constant 0 : i32
    return %c0_i32 : i32
  }
  func.func @transform_2(%arg0: i32) -> (i32, i32) {
    %c0_i32 = arith.constant 0 : i32
    %c0_i32_0 = arith.constant 0 : i32
    return %arg0, %c0_i32 : i32, i32
  }
}

</mosaic_0001>

<llo_original>
// kernel: model_forward.1
$region0: #{model_forward.1}
  #allocation0 [shape = 'u32[]', space=smem, size = 0x4, offset = 0x4, fixed_abs, tag = 'smem constant byte address 0x4 - core index']
  #allocation1 [shape = 'u32[144,128]{1,0:T(1,128)}', space=vmem, size = 0x12000, scoped, tag = 'internal scratch']
  %s0 = inlined_call_operand.vmem [shape: f32[3,128], index: 0, kind: input, shape index: {}]
  %s1 = inlined_call_operand.vmem [shape: f32[2], index: 1, kind: input, shape index: {}]
  %s2 = inlined_call_operand.vmem [shape: f32[3,128], index: 2, kind: output, shape index: {}]
  %s3 = sld [smem:[#allocation0]]
  $region52: #{model_forward.1} parent=0
    _
  %s5 = ssub.s32 1, %s3
  %s6 = scalar_select 0, %s5, %s3
  $region1: #{model_forward.1} parent=0
    #allocation2 [shape = 'u8[512]{0}', space=smem, size = 0x200, scoped, tag = 'input window, operand 1, single buffered']
    #allocation3 [shape = 's32[1]{0}', space=sflag, size = 0x4, scoped, tag = 'scoped memory for model_forward.1']
    #allocation4 [shape = 'u8[4096]{0}', space=vmem, size = 0x1000, scoped, tag = 'output window, operand 0, single buffered']
    %7 = vsyncpa [#allocation3], 0
    // Predicated region
    $region2: #{model_forward.1} parent=1 // pred_check
      _
    $region3: #{model_forward.1} parent=1 // pred_check_branch
      %9 = sbr.rel (0) target = $region5
    $region4: #{model_forward.1} parent=1 // pred_region
      _
    $region5: #{model_forward.1} parent=1 // pred_fallthru
      _
    // Predicated region
    $region6: #{model_forward.1} parent=1 // pred_check
      _
    $region7: #{model_forward.1} parent=1 // pred_check_branch
      %11 = sbr.rel (0) target = $region9
    $region8: #{model_forward.1} parent=1 // pred_region
      %s13 = ssub.s32 16, 16
      %14 = vsyncadd [#allocation3], %s13
      %s16 = sshll.u32 %s1, 4
      %s17 = int_to_ptr.vmem [resolvable:$true] %s16
      %19 = dma.vmem_to_smem %s17, 16, [#allocation2], [#allocation3]
    $region9: #{model_forward.1} parent=1 // pred_fallthru
      _
    // Predicated region
    $region10: #{model_forward.1} parent=1 // pred_check
      _
    $region11: #{model_forward.1} parent=1 // pred_check_branch
      %21 = sbr.rel (0) target = $region13
    $region12: #{model_forward.1} parent=1 // pred_region
      %22 = dma.done [#allocation3], 16
    $region13: #{model_forward.1} parent=1 // pred_fallthru
      _
    %23 = sfence
    %s24 = sld [smem:[#allocation2]]
    %s25 = sld [smem:[#allocation2 + $0x1]]
    %v26 = vld [vmem:[%s0] sm:$0xff]
    %v27 = vstv %s24
    %v28 = vmul.f32 %v26, %v27
    %v29 = vstv %s25
    %v30 = vadd.f32 %v28, %v29
    %v31 = vmul.f32 %v30, %v27
    %v32 = vadd.f32 %v31, %v29
    %vm33 = vcmp.gt.f32.partialorder %v30, 0.0
    %v34 = vsel %vm33, 1.0, 0.01
    %v35 = vmul.f32 %v32, %v34
    %36 = vst [vmem:[#allocation4] sm:$0xff] %v35
    // Predicated region
    $region14: #{model_forward.1} parent=1 // pred_check
      _
    $region15: #{model_forward.1} parent=1 // pred_check_branch
      %38 = sbr.rel (0) target = $region17
    $region16: #{model_forward.1} parent=1 // pred_region
      // Predicated region
      $region18: #{model_forward.1} parent=16 // pred_check
        _
      $region19: #{model_forward.1} parent=16 // pred_check_branch
        %40 = sbr.rel (0) target = $region21
      $region20: #{model_forward.1} parent=16 // pred_region
        // Predicated region
        $region22: #{model_forward.1} parent=20 // pred_check
          _
        $region23: #{model_forward.1} parent=20 // pred_check_branch
          %42 = sbr.rel target = $region25
        $region24: #{model_forward.1} parent=20 // pred_region
          // Predicated region
          $region37: #{model_forward.1} parent=24 // pred_check
            _
          $region38: #{model_forward.1} parent=24 // pred_check_branch
            %57 = sbr.rel (0) target = $region40
          $region39: #{model_forward.1} parent=24 // pred_region
            loop: start=0, step=1, limit=1
            $region41: #{model_forward.1} parent=39 // loop_pre_header
              _
            $region42: #{model_forward.1} parent=39 // loop_header
              %s60 = sphi 0, %s64
              %p61 = scmp.ge.s32.totalorder %s60, 1
              %s65 = sphi [#allocation4], [#allocation4]
              %s66 = sphi %s2, %s2
            $region43: #{model_forward.1} parent=39 // loop_header_branch
              %63 = sbr.rel (%p61) target = $region47
            $region44: #{model_forward.1} parent=39 // loop_body
              %v67 = vld [vmem:[%s65] sm:$0xf]
              %68 = vst [vmem:[%s66] sm:$0xf] %v67
            $region45: #{model_forward.1} parent=39 // loop_footer
              %s64 = sadd.s32 1, %s60
            $region46: #{model_forward.1} parent=39 // loop_footer_branch
              %59 = sbr.rel target = $region42
            $region47: #{model_forward.1} parent=39 // loop_exit
              _
          $region40: #{model_forward.1} parent=24 // pred_fallthru
            _
        $region25: #{model_forward.1} parent=20 // pred_fallthru
          _
        // Predicated region
        $region26: #{model_forward.1} parent=20 // pred_check
          _
        $region27: #{model_forward.1} parent=20 // pred_check_branch
          %44 = sbr.rel (0) target = $region29
        $region28: #{model_forward.1} parent=20 // pred_region
          loop: start=0, step=1, limit=1
          $region30: #{model_forward.1} parent=28 // loop_pre_header
            _
          $region31: #{model_forward.1} parent=28 // loop_header
            %s47 = sphi 0, %s51
            %p48 = scmp.ge.s32.totalorder %s47, 1
            %s52 = sphi [#allocation4], [#allocation4]
            %s53 = sphi %s2, %s2
          $region32: #{model_forward.1} parent=28 // loop_header_branch
            %50 = sbr.rel (%p48) target = $region36
          $region33: #{model_forward.1} parent=28 // loop_body
            %v54 = vld [vmem:[%s52] sm:$0xf]
            %55 = vst [vmem:[%s53] sm:$0xf] %v54
          $region34: #{model_forward.1} parent=28 // loop_footer
            %s51 = sadd.s32 1, %s47
          $region35: #{model_forward.1} parent=28 // loop_footer_branch
            %46 = sbr.rel target = $region31
          $region36: #{model_forward.1} parent=28 // loop_exit
            _
        $region29: #{model_forward.1} parent=20 // pred_fallthru
          _
      $region21: #{model_forward.1} parent=16 // pred_fallthru
        _
      %69 = vnop
    $region17: #{model_forward.1} parent=1 // pred_fallthru
      _
    // Predicated region
    $region48: #{model_forward.1} parent=1 // pred_check
      _
    $region49: #{model_forward.1} parent=1 // pred_check_branch
      %71 = sbr.rel (0) target = $region51
    $region50: #{model_forward.1} parent=1 // pred_region
      _
    $region51: #{model_forward.1} parent=1 // pred_fallthru
      _
    %72 = vsyncpa [#allocation3], 1

</llo_original>
